<compile_context>
chip_gen: v6e
topology: v6e:2x2x1
jax: 0.10.0
libtpu: 0.0.40
codegen_flags: <defaults>
</compile_context>

<pallas_src>
import math

import jax
import jax.numpy as jnp
from jax.experimental import pallas as pl
from jax.experimental.pallas import tpu as pltpu


# ---------------------------------------------------------------------------
# Kernel body: pure VPU elementwise multiply.  The mask block may be broadcast
# along a row / middle axis (block dim of 1); jnp broadcasting handles it.
# ---------------------------------------------------------------------------
def _mask_mul_kernel(x_ref, m_ref, o_ref):
    o_ref[...] = x_ref[...].astype(o_ref.dtype) * m_ref[...].astype(o_ref.dtype)


# ---------------------------------------------------------------------------
# Tiling helpers
# ---------------------------------------------------------------------------
def _sublane(dtype):
    # Native sublane packing: 8 rows for 4-byte, 16 for 2-byte, 32 for 1-byte.
    return max(8, 32 // jnp.dtype(dtype).itemsize)


# Per-x-block byte budget.  ~3 MiB keeps the fixed per-grid-step overhead <10%
# even at v7x HBM speed, and ~6x double-buffered residency (x/mask/out) is
# ~18 MiB -- inside the explicit scoped-VMEM limit we set for every generation.
_TILE_BYTE_BUDGET = 3 << 20


def _vmem_limit_bytes():
    limit = 40 << 20
    try:
        cap = int(pltpu.get_tpu_info().vmem_capacity_bytes)
        limit = min(limit, (cap * 3) // 4)  # headroom below physical VMEM (v7x: 64 MiB)
    except Exception:
        pass
    return limit


def _compiler_params(ndims):
    # TODO(synk): on v7x, verify in xprof that both TensorCores stream; if not,
    # switch the leading axis to pltpu.CORE_PARALLEL.
    return pltpu.CompilerParams(
        dimension_semantics=("parallel",) * ndims,
        vmem_limit_bytes=_vmem_limit_bytes(),
    )


def _pick_tile_c(C, itemsize, sub, budget=_TILE_BYTE_BUDGET):
    """Lane tile width.  Prefer tile_c == C (fully contiguous DMA rows); else the
    largest 128-multiple divisor of C that keeps a sublane-minimal block within
    the byte budget (avoids short strided bursts)."""
    assert C % 128 == 0
    max_c = max(128, ((budget // (sub * itemsize)) // 128) * 128)
    if C <= max_c:
        return C
    q = C // 128
    best, d = 1, 1
    while d * d <= q:
        if q % d == 0:
            for cand in (d, q // d):
                if cand * 128 <= max_c and cand > best:
                    best = cand
        d += 1
    return best * 128


def _pick_tile_r(R, tile_c, itemsize, sub, budget=_TILE_BYTE_BUDGET):
    """Sublane-aligned row tile near the byte budget; prefer a divisor of R so
    there is no partial tail block (keeps unmasked vst + full-length DMA)."""
    target = max(sub, (budget // (tile_c * itemsize)) // sub * sub)
    if target >= R:
        return R
    best, d = None, 1
    while d * d <= R:
        if R % d == 0:
            for cand in (d, R // d):
                if cand <= target and cand % sub == 0 and (best is None or cand > best):
                    best = cand
        d += 1
    if best is not None and best * 2 >= target:
        return best
    return target


# ---------------------------------------------------------------------------
# pallas_call wrappers
# ---------------------------------------------------------------------------
def _mask_mul_2d(x2, m2, out_dtype):
    """x2: [R, C]; m2: [R, C] or [1, C] (row broadcast).  C % 128 == 0."""
    R, C = x2.shape
    row_bcast = m2.shape[0] == 1
    itemsize = max(jnp.dtype(x2.dtype).itemsize, jnp.dtype(out_dtype).itemsize)
    sub = max(_sublane(x2.dtype), _sublane(out_dtype))
    if not row_bcast:
        sub = max(sub, _sublane(m2.dtype))

    tile_c = _pick_tile_c(C, itemsize, sub)
    tile_r = _pick_tile_r(R, tile_c, itemsize, sub)
    grid = (pl.cdiv(R, tile_r), pl.cdiv(C, tile_c))

    if row_bcast:
        m_spec = pl.BlockSpec((1, tile_c), lambda i, j: (0, j))
    else:
        m_spec = pl.BlockSpec((tile_r, tile_c), lambda i, j: (i, j))

    return pl.pallas_call(
        _mask_mul_kernel,
        out_shape=jax.ShapeDtypeStruct((R, C), out_dtype),
        grid_spec=pltpu.PrefetchScalarGridSpec(
            num_scalar_prefetch=0,
            grid=grid,
            in_specs=[pl.BlockSpec((tile_r, tile_c), lambda i, j: (i, j)), m_spec],
            out_specs=pl.BlockSpec((tile_r, tile_c), lambda i, j: (i, j)),
        ),
        compiler_params=_compiler_params(2),
    )(x2, m2)


def _mask_mul_3d(x3, m3, out_dtype):
    """x3: [O, M, I]; m3: [O, 1, I] (middle-axis broadcast).  I % 128 == 0."""
    O, Md, I = x3.shape
    itemsize = max(jnp.dtype(x3.dtype).itemsize, jnp.dtype(out_dtype).itemsize)
    sub = max(_sublane(x3.dtype), _sublane(out_dtype))

    tile_i = _pick_tile_c(I, itemsize, sub)
    tile_m = _pick_tile_r(Md, tile_i, itemsize, sub)
    grid = (O, pl.cdiv(Md, tile_m), pl.cdiv(I, tile_i))

    return pl.pallas_call(
        _mask_mul_kernel,
        out_shape=jax.ShapeDtypeStruct((O, Md, I), out_dtype),
        grid_spec=pltpu.PrefetchScalarGridSpec(
            num_scalar_prefetch=0,
            grid=grid,
            in_specs=[
                pl.BlockSpec((1, tile_m, tile_i), lambda o, m, i: (o, m, i)),
                pl.BlockSpec((1, 1, tile_i), lambda o, m, i: (o, 0, i)),
            ],
            out_specs=pl.BlockSpec((1, tile_m, tile_i), lambda o, m, i: (o, m, i)),
        ),
        compiler_params=_compiler_params(3),
    )(x3, m3)


# ---------------------------------------------------------------------------
# Broadcast analysis + dispatch
# ---------------------------------------------------------------------------
def _broadcast_plan(x_shape, m_shape):
    """Classify how the mask broadcasts against x.

    Returns ("same",) if mask == x after left-padding with 1s, ("mid", a, b) if
    the broadcast axes form the contiguous run [a, b), or None for the general
    (materializing) fallback (mask expands x / non-contiguous broadcast)."""
    nd = len(x_shape)
    if len(m_shape) > nd:
        return None
    pm = (1,) * (nd - len(m_shape)) + tuple(m_shape)
    for xs, ms in zip(x_shape, pm):
        if ms != xs and ms != 1:
            return None
    bcast = [i for i in range(nd) if pm[i] == 1 and x_shape[i] != 1]
    if not bcast:
        return ("same",)
    a, b = bcast[0], bcast[-1] + 1
    for i in range(a, b):
        if pm[i] != 1:
            return None
    return ("mid", a, b)


def _masked_mul(x, mask, out_dtype):
    out_shape = x.shape
    n = x.size
    if n == 0 or mask.size == 0:
        return jnp.zeros(jnp.broadcast_shapes(x.shape, mask.shape), out_dtype)

    plan = _broadcast_plan(x.shape, mask.shape)

    if plan is not None and plan[0] == "same":
        if mask.shape != x.shape:
            mask = mask.reshape(x.shape)
        # Widest lane-dense slab that divides n: lane-dense out_spec is the
        # biggest single store/DMA lever; wider C -> fewer grid steps.
        for lanes in (8192, 4096, 2048, 1024, 512, 256, 128):
            if n % lanes == 0:
                rows = n // lanes
                out2 = _mask_mul_2d(
                    x.reshape(rows, lanes), mask.reshape(rows, lanes), out_dtype
                )
                return out2.reshape(out_shape)
        # Rare: element count not a multiple of 128 -> pad once.
        lanes = 1024
        rows = pl.cdiv(n, lanes)
        pad = rows * lanes - n
        xf = jnp.pad(x.reshape(-1), (0, pad))
        mf = jnp.pad(mask.reshape(-1), (0, pad))
        out2 = _mask_mul_2d(xf.reshape(rows, lanes), mf.reshape(rows, lanes), out_dtype)
        return out2.reshape(-1)[:n].reshape(out_shape)

    if plan is not None and plan[0] == "mid":
        _, a, b = plan
        outer = math.prod(x.shape[:a])
        mid = math.prod(x.shape[a:b])
        inner = math.prod(x.shape[b:])
        if inner >= 128 and inner % 128 == 0:
            # Broadcast expressed via the mask index_map (middle block index
            # pinned to 0); covers [H,W], [1,1,H,W], [C,H,W], [B,1,H,W] masks.
            out3 = _mask_mul_3d(
                x.reshape(outer, mid, inner),
                mask.reshape(outer, 1, inner),
                out_dtype,
            )
            return out3.reshape(out_shape)

    # General fallback: materialize ONLY the operand(s) that need broadcasting.
    # TODO(synk): a trailing-axis (column) broadcast BlockSpec variant could also
    # avoid materializing masks like (B, C, 1, 1); low value for this operator.
    bshape = jnp.broadcast_shapes(x.shape, mask.shape)
    xb = x if x.shape == bshape else jnp.broadcast_to(x, bshape)
    mb = mask if mask.shape == bshape else jnp.broadcast_to(mask, bshape)
    return _masked_mul(xb, mb, out_dtype)


def masking_forward(x, mask):
    """Same semantics as the PyTorch module: ``x * mask`` (broadcasting +
    NumPy/Torch-style type promotion)."""
    x = jnp.asarray(x)
    mask = jnp.asarray(mask)

    out_dtype = jnp.result_type(x.dtype, mask.dtype)
    bool_out = out_dtype == jnp.bool_
    kernel_out_dtype = jnp.int8 if bool_out else out_dtype

    # Transport bools as int8 (Mosaic-friendly; values 0/1 preserved).
    # TODO(synk): this convert is one extra (cheap) XLA pass on the bool-mask
    # path; a zero-copy PRED reinterpret is not portable, so we accept it.
    if mask.dtype == jnp.bool_:
        mask = mask.astype(jnp.int8)
    if x.dtype == jnp.bool_:
        x = x.astype(jnp.int8)

    out = _masked_mul(x, mask, kernel_out_dtype)
    return out.astype(jnp.bool_) if bool_out else out


if __name__ == "__main__":
    key = jax.random.PRNGKey(0)
    kx, km = jax.random.split(key)

    # Small NCHW shapes consistent with an image/k-space masking operator.
    B, C, H, W = 2, 4, 16, 16
    x = jax.random.normal(kx, (B, C, H, W), dtype=jnp.float32)

    # 1) Same-shape binary-ish float mask.
    mask = (jax.random.uniform(km, (B, C, H, W)) > 0.5).astype(jnp.float32)
    out = jax.block_until_ready(masking_forward(x, mask))
    ref = x * mask
    assert out.shape == ref.shape and out.dtype == ref.dtype
    assert jnp.allclose(out, ref), "mismatch vs reference (same-shape mask)"

    # 2) Broadcastable k-space-style mask [1, 1, H, W] (never materialized).
    mask_b = (jax.random.uniform(km, (1, 1, H, W)) > 0.5).astype(jnp.float32)
    out_b = jax.block_until_ready(masking_forward(x, mask_b))
    assert jnp.allclose(out_b, x * mask_b), "mismatch vs reference (broadcast mask)"

    # 3) Mixed-dtype promotion: bf16 x * f32 mask -> f32 (torch semantics).
    x_bf16 = x.astype(jnp.bfloat16)
    out_p = jax.block_until_ready(masking_forward(x_bf16, mask))
    ref_p = x_bf16.astype(jnp.float32) * mask
    assert out_p.dtype == jnp.float32
    assert jnp.allclose(out_p, ref_p), "mismatch vs reference (dtype promotion)"

    print("KERNEL_OK")
</pallas_src>

<mosaic_0001>
module attributes {stable_mosaic.version = 11 : i64} {
  func.func @_mask_mul_kernel(%arg0: i32, %arg1: i32, %arg2: memref<1x2048xf32, #tpu.memory_space<vmem>>, %arg3: memref<1x2048xf32, #tpu.memory_space<vmem>>, %arg4: memref<1x2048xf32, #tpu.memory_space<vmem>>) attributes {dimension_semantics = [#tpu.dimension_semantics<parallel>, #tpu.dimension_semantics<parallel>], iteration_bounds = array<i64: 1, 1>, scalar_prefetch = 0 : i64, scratch_operands = 0 : i64, tpu.core_type = #tpu.core_type<tc>, window_params = [{transform_indices = @transform_0, window_bounds = array<i64: 1, 2048>}, {transform_indices = @transform_1, window_bounds = array<i64: 1, 2048>}, {transform_indices = @transform_2, window_bounds = array<i64: 1, 2048>}]} {
    %c0 = arith.constant 0 : index
    %c0_0 = arith.constant 0 : index
    %0 = vector.load %arg2[%c0, %c0_0] : memref<1x2048xf32, #tpu.memory_space<vmem>>, vector<1x2048xf32>
    %c0_1 = arith.constant 0 : index
    %c0_2 = arith.constant 0 : index
    %1 = vector.load %arg3[%c0_1, %c0_2] : memref<1x2048xf32, #tpu.memory_space<vmem>>, vector<1x2048xf32>
    %2 = arith.mulf %0, %1 : vector<1x2048xf32>
    %c0_3 = arith.constant 0 : index
    %c0_4 = arith.constant 0 : index
    %3 = vector.load %arg4[%c0_3, %c0_4] : memref<1x2048xf32, #tpu.memory_space<vmem>>, vector<1x2048xf32>
    tpu.vector_store %arg4[%c0_3, %c0_4], %2 {strides = array<i32>} : memref<1x2048xf32, #tpu.memory_space<vmem>>, vector<1x2048xf32>,
    return
  }
  func.func @transform_0(%arg0: i32, %arg1: i32) -> (i32, i32) {
    %c0_i32 = arith.constant 0 : i32
    return %arg0, %arg1 : i32, i32
  }
  func.func @transform_1(%arg0: i32, %arg1: i32) -> (i32, i32) {
    %c0_i32 = arith.constant 0 : i32
    %c0_i32_0 = arith.constant 0 : i32
    return %c0_i32, %arg1 : i32, i32
  }
  func.func @transform_2(%arg0: i32, %arg1: i32) -> (i32, i32) {
    %c0_i32 = arith.constant 0 : i32
    return %arg0, %arg1 : i32, i32
  }
}

</mosaic_0001>

<llo_original>
// kernel: tpu_custom_call.1
$region0: #{tpu_custom_call.1}
  #allocation0 [shape = 'u32[]', space=smem, size = 0x4, offset = 0x4, fixed_abs, tag = 'smem constant byte address 0x4 - core index']
  #allocation1 [shape = 'u32[144,128]{1,0:T(1,128)}', space=vmem, size = 0x12000, scoped, tag = 'internal scratch']
  %s0 = inlined_call_operand.hbm [shape: f32[1,2048], index: 0, kind: input, shape index: {}]
  %s1 = inlined_call_operand.hbm [shape: f32[1,2048], index: 1, kind: input, shape index: {}]
  %s2 = inlined_call_operand.hbm [shape: f32[1,2048], index: 2, kind: output, shape index: {}]
  %s3 = sld [smem:[#allocation0]]
  $region26: #{tpu_custom_call.1} parent=0
    _
  %s5 = ssub.s32 1, %s3
  %s6 = scalar_select 0, %s5, %s3
  $region1: #{tpu_custom_call.1} parent=0
    #allocation2 [shape = 'u8[8192]{0}', space=vmem, size = 0x2000, scoped, tag = 'input window, operand 0, single buffered']
    #allocation3 [shape = 's32[1]{0}', space=sflag, size = 0x4, scoped, tag = 'scoped memory for tpu_custom_call.1']
    #allocation4 [shape = 's32[1]{0}', space=sflag, size = 0x4, scoped, tag = 'scoped memory for tpu_custom_call.1']
    #allocation5 [shape = 'u8[8192]{0}', space=vmem, size = 0x2000, scoped, tag = 'input window, operand 1, single buffered']
    #allocation6 [shape = 's32[1]{0}', space=sflag, size = 0x4, scoped, tag = 'scoped memory for tpu_custom_call.1']
    #allocation7 [shape = 'u8[8192]{0}', space=vmem, size = 0x2000, scoped, tag = 'output window, operand 0, single buffered']
    %7 = vsyncpa [#allocation3], 0
    %8 = vsyncpa [#allocation6], 0
    %9 = vsyncpa [#allocation4], 0
    // Predicated region
    $region2: #{tpu_custom_call.1} parent=1 // pred_check
      _
    $region3: #{tpu_custom_call.1} parent=1 // pred_check_branch
      %11 = sbr.rel (0) target = $region5
    $region4: #{tpu_custom_call.1} parent=1 // pred_region
      %s13 = ssub.s32 256, 256
      %14 = vsyncadd [#allocation3], %s13
      %s16 = sshll.u32 [#allocation2], 4
      %s17 = int_to_ptr.vmem [resolvable:$true] %s16
      %19 = dma.hbm_to_vmem [thread:$0]  %s0, 256, %s17, [#allocation3]
    $region5: #{tpu_custom_call.1} parent=1 // pred_fallthru
      _
    // Predicated region
    $region6: #{tpu_custom_call.1} parent=1 // pred_check
      _
    $region7: #{tpu_custom_call.1} parent=1 // pred_check_branch
      %21 = sbr.rel (0) target = $region9
    $region8: #{tpu_custom_call.1} parent=1 // pred_region
      %s23 = ssub.s32 256, 256
      %24 = vsyncadd [#allocation6], %s23
      %s26 = sshll.u32 [#allocation5], 4
      %s27 = int_to_ptr.vmem [resolvable:$true] %s26
      %29 = dma.hbm_to_vmem [thread:$0]  %s1, 256, %s27, [#allocation6]
    $region9: #{tpu_custom_call.1} parent=1 // pred_fallthru
      _
    // Predicated region
    $region10: #{tpu_custom_call.1} parent=1 // pred_check
      _
    $region11: #{tpu_custom_call.1} parent=1 // pred_check_branch
      %31 = sbr.rel (0) target = $region13
    $region12: #{tpu_custom_call.1} parent=1 // pred_region
      %32 = dma.done [#allocation3], 256
    $region13: #{tpu_custom_call.1} parent=1 // pred_fallthru
      _
    // Predicated region
    $region14: #{tpu_custom_call.1} parent=1 // pred_check
      _
    $region15: #{tpu_custom_call.1} parent=1 // pred_check_branch
      %34 = sbr.rel (0) target = $region17
    $region16: #{tpu_custom_call.1} parent=1 // pred_region
      %35 = dma.done [#allocation6], 256
    $region17: #{tpu_custom_call.1} parent=1 // pred_fallthru
      _
    %v36 = vld [vmem:[#allocation2] sm:$0xff]
    %v37 = vld [vmem:[#allocation2 + $0x8] sm:$0xff]
    %v38 = vld [vmem:[#allocation5] sm:$0xff]
    %v39 = vld [vmem:[#allocation5 + $0x8] sm:$0xff]
    %v40 = vmul.f32 %v36, %v38
    %v41 = vmul.f32 %v37, %v39
    %42 = vst [vmem:[#allocation7] sm:$0xff] %v40
    %43 = vst [vmem:[#allocation7 + $0x8] sm:$0xff] %v41
    // Predicated region
    $region18: #{tpu_custom_call.1} parent=1 // pred_check
      _
    $region19: #{tpu_custom_call.1} parent=1 // pred_check_branch
      %45 = sbr.rel (0) target = $region21
    $region20: #{tpu_custom_call.1} parent=1 // pred_region
      %s47 = ssub.s32 256, 256
      %48 = vsyncadd [#allocation4], %s47
      %s50 = sshll.u32 [#allocation7], 4
      %s51 = int_to_ptr.vmem [resolvable:$true] %s50
      %53 = dma.vmem_to_hbm [thread:$0]  %s51, 256, %s2, [#allocation4]
    $region21: #{tpu_custom_call.1} parent=1 // pred_fallthru
      _
    // Predicated region
    $region22: #{tpu_custom_call.1} parent=1 // pred_check
      _
    $region23: #{tpu_custom_call.1} parent=1 // pred_check_branch
      %55 = sbr.rel (0) target = $region25
    $region24: #{tpu_custom_call.1} parent=1 // pred_region
      %56 = dma.done [#allocation4], 256
    $region25: #{tpu_custom_call.1} parent=1 // pred_fallthru
      _
    %57 = vsyncpa [#allocation3], 1
    %58 = vsyncpa [#allocation6], 1
    %59 = vsyncpa [#allocation4], 1

</llo_original>
